<compile_context>
chip_gen: v5e
topology: v5e:2x2
jax: 0.10.0
libtpu: 0.0.40
codegen_flags: <defaults>
</compile_context>

<pallas_src>
import functools

import jax
import jax.numpy as jnp
from jax import lax
from jax.experimental import pallas as pl
from jax.experimental.pallas import tpu as pltpu


def _matrix_attn_kernel(dec_ref, emb_ref, elen_ref, w_ref, b_ref,
                        out_ref, attn_ref, *, compute_dtype):
    # Block shapes:
    #   dec_ref  : (bb, tm, D_in)
    #   emb_ref  : (bb, T_emb, D_out)
    #   elen_ref : (bb, 1) int32
    #   w_ref    : (D_out, D_in)
    #   b_ref    : (1, D_out)
    #   out_ref  : (bb, tm, D_out)
    #   attn_ref : (bb, tm, T_emb)
    dec = dec_ref[...].astype(compute_dtype)
    emb = emb_ref[...].astype(compute_dtype)
    w = w_ref[...].astype(compute_dtype)
    bias = b_ref[...]                                  # (1, D_out) f32

    # nn.Linear: decsmall = dec @ W^T + b.  Contract trailing dims directly on
    # the MXU — no materialized transpose of W.
    decsmall = lax.dot_general(
        dec, w, (((2,), (1,)), ((), ())),
        preferred_element_type=jnp.float32) + bias     # (bb, tm, D_out) f32

    # unnorm = bmm(decsmall, emb^T): contract D_out, batch over bb (no emb.T).
    scores = lax.dot_general(
        decsmall.astype(compute_dtype), emb,
        (((2,), (2,)), ((0,), (0,))),
        preferred_element_type=jnp.float32)            # (bb, tm, T_emb) f32

    # Mask emb positions >= elen[b] with -inf (per batch row of this block).
    # NOTE: elen[b] == 0 gives an all -inf row -> NaN softmax, matching PyTorch.
    lengths = elen_ref[...]                            # (bb, 1) int32
    col = lax.broadcasted_iota(jnp.int32, scores.shape, dimension=2)
    masked = jnp.where(col >= lengths[:, :, None], -jnp.inf, scores)

    # Softmax over the emb axis, kept entirely in f32.
    m = jnp.max(masked, axis=-1, keepdims=True)
    e = jnp.exp(masked - m)
    s = jnp.sum(e, axis=-1, keepdims=True)
    attn = e * pl.reciprocal(s, approx=False)          # exact 1/s on the EUP path

    # out = bmm(attn, emb): contract T_emb, batch over bb.
    out = lax.dot_general(
        attn.astype(compute_dtype), emb,
        (((2,), (1,)), ((0,), (0,))),
        preferred_element_type=jnp.float32)            # (bb, tm, D_out) f32

    out_ref[...] = out.astype(out_ref.dtype)
    attn_ref[...] = attn.astype(attn_ref.dtype)


def matrix_attn(dec, emb, elen, w, bias, *,
                compute_dtype=jnp.float32, block_b=8, block_t=256):
    B, T_dec, D_in = dec.shape
    Be, T_emb, D_out = emb.shape
    assert Be == B
    assert w.shape == (D_out, D_in)
    assert bias.shape == (D_out,)

    # Tile sizes: amortize per-step overhead over up to `block_b` batch elements
    # and cap the query tile at `block_t` rows so VMEM stays bounded for long
    # sequences (important on v7x's 64 MiB VMEM).
    bb = B if B <= block_b else block_b
    tm = T_dec if T_dec <= block_t else block_t

    bias2d = bias.reshape(1, D_out)
    elen2d = elen.astype(jnp.int32).reshape(B, 1)

    grid = (pl.cdiv(B, bb), pl.cdiv(T_dec, tm))

    # Rough resident-VMEM accounting (bytes per step, f32 worst case), x2 for
    # double buffering plus headroom; clamp to [32 MiB, 48 MiB] so the request
    # is valid on v5e/v6e (128 MiB physical) and v7x (64 MiB physical).
    blk_bytes = 4 * (bb * tm * D_in + bb * T_emb * D_out + D_out * D_in + D_out
                     + bb * tm * D_out + bb * tm * T_emb + bb)
    vmem_limit = int(min(max(4 * blk_bytes, 32 * 1024 * 1024),
                         48 * 1024 * 1024))

    kernel = functools.partial(_matrix_attn_kernel, compute_dtype=compute_dtype)

    out, attn = pl.pallas_call(
        kernel,
        grid_spec=pltpu.PrefetchScalarGridSpec(
            num_scalar_prefetch=0,
            grid=grid,
            in_specs=[
                pl.BlockSpec((bb, tm, D_in), lambda bi, ti: (bi, ti, 0)),
                pl.BlockSpec((bb, T_emb, D_out), lambda bi, ti: (bi, 0, 0)),
                pl.BlockSpec((bb, 1), lambda bi, ti: (bi, 0)),
                # Constant block index -> W / bias are not re-fetched per step.
                pl.BlockSpec((D_out, D_in), lambda bi, ti: (0, 0)),
                pl.BlockSpec((1, D_out), lambda bi, ti: (0, 0)),
            ],
            out_specs=[
                pl.BlockSpec((bb, tm, D_out), lambda bi, ti: (bi, ti, 0)),
                pl.BlockSpec((bb, tm, T_emb), lambda bi, ti: (bi, ti, 0)),
            ],
        ),
        out_shape=(
            jax.ShapeDtypeStruct((B, T_dec, D_out), dec.dtype),
            jax.ShapeDtypeStruct((B, T_dec, T_emb), jnp.float32),
        ),
        compiler_params=pltpu.CompilerParams(
            dimension_semantics=("parallel", "parallel"),
            vmem_limit_bytes=vmem_limit,
        ),
    )(dec, emb, elen2d, w, bias2d)
    return out, attn


def _reference(dec, emb, elen, w, bias):
    decsmall = jnp.einsum("btd,od->bto", dec, w) + bias[None, None, :]
    scores = jnp.einsum("bto,bso->bts", decsmall, emb)
    col = jnp.arange(emb.shape[1])[None, None, :]
    masked = jnp.where(col >= elen[:, None, None], -jnp.inf, scores)
    attn = jax.nn.softmax(masked, axis=2)
    out = jnp.einsum("bts,bso->bto", attn, emb)
    return out, attn


if __name__ == "__main__":
    B, T_dec, T_emb = 2, 8, 8
    D_in, D_out = 32, 32          # linin=32, linout=32

    key = jax.random.PRNGKey(0)
    k1, k2, k3, k4 = jax.random.split(key, 4)

    dec = jax.random.normal(k1, (B, T_dec, D_in), dtype=jnp.float32)
    emb = jax.random.normal(k2, (B, T_emb, D_out), dtype=jnp.float32)
    elen = jnp.array([T_emb, T_emb - 3], dtype=jnp.int32)

    # Deterministic nn.Linear-style init (uniform in +/- 1/sqrt(fan_in)).
    bound = 1.0 / (D_in ** 0.5)
    w = jax.random.uniform(k3, (D_out, D_in), jnp.float32, -bound, bound)
    bias = jax.random.uniform(k4, (D_out,), jnp.float32, -bound, bound)

    ref_out, ref_attn = _reference(dec, emb, elen, w, bias)

    # f32 MXU-input path (bit-faithful to the reference tolerance).
    out, attn = matrix_attn(dec, emb, elen, w, bias)
    out, attn = jax.block_until_ready((out, attn))
    assert jnp.allclose(out, ref_out, atol=1e-4, rtol=1e-4)
    assert jnp.allclose(attn, ref_attn, atol=1e-4, rtol=1e-4)

    # bf16 MXU-input path (f32 accumulation, f32 softmax) — the recommended
    # production setting on v5e/v6e/v7x; checked against the f32 reference with
    # a bf16-appropriate tolerance.
    out_bf, attn_bf = matrix_attn(dec, emb, elen, w, bias,
                                  compute_dtype=jnp.bfloat16)
    out_bf, attn_bf = jax.block_until_ready((out_bf, attn_bf))
    assert jnp.allclose(out_bf, ref_out, atol=0.25, rtol=0.25)
    assert jnp.allclose(attn_bf, ref_attn, atol=0.25, rtol=0.25)

    print("KERNEL_OK")
</pallas_src>

<mosaic_0001>
module attributes {stable_mosaic.version = 11 : i64} {
  func.func @_matrix_attn_kernel(%arg0: i32, %arg1: i32, %arg2: memref<2x8x32xf32, #tpu.memory_space<vmem>>, %arg3: memref<2x8x32xf32, #tpu.memory_space<vmem>>, %arg4: memref<2x1xi32, #tpu.memory_space<vmem>>, %arg5: memref<32x32xf32, #tpu.memory_space<vmem>>, %arg6: memref<1x32xf32, #tpu.memory_space<vmem>>, %arg7: memref<2x8x32xf32, #tpu.memory_space<vmem>>, %arg8: memref<2x8x8xf32, #tpu.memory_space<vmem>>) attributes {dimension_semantics = [#tpu.dimension_semantics<parallel>, #tpu.dimension_semantics<parallel>], iteration_bounds = array<i64: 1, 1>, scalar_prefetch = 0 : i64, scratch_operands = 0 : i64, tpu.core_type = #tpu.core_type<tc>, window_params = [{transform_indices = @transform_0, window_bounds = array<i64: 2, 8, 32>}, {transform_indices = @transform_1, window_bounds = array<i64: 2, 8, 32>}, {transform_indices = @transform_2, window_bounds = array<i64: 2, 1>}, {pipeline_mode = #tpu.pipeline_mode<synchronous>, transform_indices = @transform_3, window_bounds = array<i64: 32, 32>}, {pipeline_mode = #tpu.pipeline_mode<synchronous>, transform_indices = @transform_4, window_bounds = array<i64: 1, 32>}, {transform_indices = @transform_5, window_bounds = array<i64: 2, 8, 32>}, {transform_indices = @transform_6, window_bounds = array<i64: 2, 8, 8>}]} {
    %c0 = arith.constant 0 : index
    %c0_0 = arith.constant 0 : index
    %c0_1 = arith.constant 0 : index
    %0 = vector.load %arg2[%c0, %c0_0, %c0_1] : memref<2x8x32xf32, #tpu.memory_space<vmem>>, vector<2x8x32xf32>
    %c0_2 = arith.constant 0 : index
    %c0_3 = arith.constant 0 : index
    %c0_4 = arith.constant 0 : index
    %1 = vector.load %arg3[%c0_2, %c0_3, %c0_4] : memref<2x8x32xf32, #tpu.memory_space<vmem>>, vector<2x8x32xf32>
    %c0_5 = arith.constant 0 : index
    %c0_6 = arith.constant 0 : index
    %2 = vector.load %arg5[%c0_5, %c0_6] : memref<32x32xf32, #tpu.memory_space<vmem>>, vector<32x32xf32>
    %c0_7 = arith.constant 0 : index
    %c0_8 = arith.constant 0 : index
    %3 = vector.load %arg6[%c0_7, %c0_8] : memref<1x32xf32, #tpu.memory_space<vmem>>, vector<1x32xf32>
    %cst = arith.constant dense<0.000000e+00> : vector<2x8x32xf32>
    %4 = tpu.matmul %0, %2, %cst {dimension_numbers = #tpu.dot_dimension_numbers<[2], [1], [0, 1], [0], [0, 0, 0, 1, 1, 0], [], []>} : vector<2x8x32xf32>, vector<32x32xf32>, vector<2x8x32xf32> -> vector<2x8x32xf32>
    %5 = vector.shape_cast %3 : vector<1x32xf32> to vector<1x1x32xf32>
    %6 = vector.broadcast %5 : vector<1x1x32xf32> to vector<2x8x32xf32>
    %7 = arith.addf %4, %6 : vector<2x8x32xf32>
    %cst_9 = arith.constant dense<0.000000e+00> : vector<2x8x8xf32>
    %8 = tpu.matmul %7, %1, %cst_9 {dimension_numbers = #tpu.dot_dimension_numbers<[2], [2], [1], [1], [0, 0, 0, 1, 1, 1], [0], [0]>} : vector<2x8x32xf32>, vector<2x8x32xf32>, vector<2x8x8xf32> -> vector<2x8x8xf32>
    %c0_10 = arith.constant 0 : index
    %c0_11 = arith.constant 0 : index
    %9 = vector.load %arg4[%c0_10, %c0_11] : memref<2x1xi32, #tpu.memory_space<vmem>>, vector<2x1xi32>
    %10 = tpu.iota {dimensions = array<i32: 2>} : vector<2x8x8xi32>
    %11 = vector.shape_cast %9 : vector<2x1xi32> to vector<2x1x1xi32>
    %12 = vector.broadcast %11 : vector<2x1x1xi32> to vector<2x8x8xi32>
    %13 = arith.cmpi sge, %10, %12 : vector<2x8x8xi32>
    %cst_12 = arith.constant 0xFF800000 : f32
    %14 = vector.broadcast %cst_12 : f32 to vector<2x8x8xf32>
    %15 = arith.select %13, %14, %8 : vector<2x8x8xi1>, vector<2x8x8xf32>
    %cst_13 = arith.constant dense<0xFF800000> : vector<2x8xf32>
    %16 = vector.multi_reduction <maximumf>, %15, %cst_13 [2] : vector<2x8x8xf32> to vector<2x8xf32>
    %17 = vector.shape_cast %16 : vector<2x8xf32> to vector<2x8x1xf32>
    %18 = vector.broadcast %17 : vector<2x8x1xf32> to vector<2x8x8xf32>
    %19 = arith.subf %15, %18 : vector<2x8x8xf32>
    %20 = math.exp %19 : vector<2x8x8xf32>
    %cst_14 = arith.constant dense<0.000000e+00> : vector<2x8xf32>
    %21 = vector.multi_reduction <add>, %20, %cst_14 [2] : vector<2x8x8xf32> to vector<2x8xf32>
    %22 = vector.shape_cast %21 : vector<2x8xf32> to vector<2x8x1xf32>
    %23 = tpu.reciprocal %22 : vector<2x8x1xf32> -> vector<2x8x1xf32>
    %24 = vector.broadcast %23 : vector<2x8x1xf32> to vector<2x8x8xf32>
    %25 = arith.mulf %20, %24 : vector<2x8x8xf32>
    %cst_15 = arith.constant dense<0.000000e+00> : vector<2x8x32xf32>
    %26 = tpu.matmul %25, %1, %cst_15 {dimension_numbers = #tpu.dot_dimension_numbers<[2], [1], [1], [2], [0, 0, 0, 1, 1, 2], [0], [0]>} : vector<2x8x8xf32>, vector<2x8x32xf32>, vector<2x8x32xf32> -> vector<2x8x32xf32>
    %c0_16 = arith.constant 0 : index
    %c0_17 = arith.constant 0 : index
    %c0_18 = arith.constant 0 : index
    %27 = vector.load %arg7[%c0_16, %c0_17, %c0_18] : memref<2x8x32xf32, #tpu.memory_space<vmem>>, vector<2x8x32xf32>
    tpu.vector_store %arg7[%c0_16, %c0_17, %c0_18], %26 {strides = array<i32>} : memref<2x8x32xf32, #tpu.memory_space<vmem>>, vector<2x8x32xf32>,
    %c0_19 = arith.constant 0 : index
    %c0_20 = arith.constant 0 : index
    %c0_21 = arith.constant 0 : index
    %28 = vector.load %arg8[%c0_19, %c0_20, %c0_21] : memref<2x8x8xf32, #tpu.memory_space<vmem>>, vector<2x8x8xf32>
    tpu.vector_store %arg8[%c0_19, %c0_20, %c0_21], %25 {strides = array<i32>} : memref<2x8x8xf32, #tpu.memory_space<vmem>>, vector<2x8x8xf32>,
    return
  }
  func.func @transform_0(%arg0: i32, %arg1: i32) -> (i32, i32, i32) {
    %c0_i32 = arith.constant 0 : i32
    %c0_i32_0 = arith.constant 0 : i32
    return %arg0, %arg1, %c0_i32 : i32, i32, i32
  }
  func.func @transform_1(%arg0: i32, %arg1: i32) -> (i32, i32, i32) {
    %c0_i32 = arith.constant 0 : i32
    %c0_i32_0 = arith.constant 0 : i32
    %c0_i32_1 = arith.constant 0 : i32
    return %arg0, %c0_i32, %c0_i32_0 : i32, i32, i32
  }
  func.func @transform_2(%arg0: i32, %arg1: i32) -> (i32, i32) {
    %c0_i32 = arith.constant 0 : i32
    %c0_i32_0 = arith.constant 0 : i32
    return %arg0, %c0_i32 : i32, i32
  }
  func.func @transform_3(%arg0: i32, %arg1: i32) -> (i32, i32) {
    %c0_i32 = arith.constant 0 : i32
    %c0_i32_0 = arith.constant 0 : i32
    %c0_i32_1 = arith.constant 0 : i32
    return %c0_i32, %c0_i32_0 : i32, i32
  }
  func.func @transform_4(%arg0: i32, %arg1: i32) -> (i32, i32) {
    %c0_i32 = arith.constant 0 : i32
    %c0_i32_0 = arith.constant 0 : i32
    %c0_i32_1 = arith.constant 0 : i32
    return %c0_i32, %c0_i32_0 : i32, i32
  }
  func.func @transform_5(%arg0: i32, %arg1: i32) -> (i32, i32, i32) {
    %c0_i32 = arith.constant 0 : i32
    %c0_i32_0 = arith.constant 0 : i32
    return %arg0, %arg1, %c0_i32 : i32, i32, i32
  }
  func.func @transform_6(%arg0: i32, %arg1: i32) -> (i32, i32, i32) {
    %c0_i32 = arith.constant 0 : i32
    %c0_i32_0 = arith.constant 0 : i32
    return %arg0, %arg1, %c0_i32 : i32, i32, i32
  }
}

</mosaic_0001>

<llo_original>
// kernel: tpu_custom_call.1
$region0: #{tpu_custom_call.1}
  #allocation0 [shape = 'u32[]', space=smem, size = 0x4, offset = 0x4, fixed_abs, tag = 'smem constant byte address 0x4 - core index']
  #allocation1 [shape = 'u32[72,128]{1,0:T(1,128)}', space=vmem, size = 0x9000, scoped, tag = 'internal scratch']
  %s0 = inlined_call_operand.hbm [shape: f32[2,8,32], index: 0, kind: input, shape index: {}]
  %s1 = inlined_call_operand.hbm [shape: f32[2,8,32], index: 1, kind: input, shape index: {}]
  %s2 = inlined_call_operand.vmem [shape: s32[2,1], index: 2, kind: input, shape index: {}]
  %s3 = inlined_call_operand.hbm [shape: f32[32,32], index: 3, kind: input, shape index: {}]
  %s4 = inlined_call_operand.vmem [shape: f32[1,32], index: 4, kind: input, shape index: {}]
  %s5 = inlined_call_operand.hbm [shape: f32[2,8,32], index: 5, kind: output, shape index: {0}]
  %s6 = inlined_call_operand.hbm [shape: f32[2,8,8], index: 6, kind: output, shape index: {1}]
  %7 = xla_tuple %s5, %s6
  %s8 = sld [smem:[#allocation0]]
  $region50: #{tpu_custom_call.1} parent=0
    _
  %s10 = ssub.s32 1, %s8
  %s11 = scalar_select 0, %s10, %s8
  $region1: #{tpu_custom_call.1} parent=0
    #allocation2 [shape = 'u8[8192]{0}', space=vmem, size = 0x2000, scoped, tag = 'input window, operand 0, single buffered']
    #allocation3 [shape = 's32[1]{0}', space=sflag, size = 0x4, scoped, tag = 'scoped memory for tpu_custom_call.1']
    #allocation4 [shape = 's32[1]{0}', space=sflag, size = 0x4, scoped, tag = 'scoped memory for tpu_custom_call.1']
    #allocation5 [shape = 'u8[8192]{0}', space=vmem, size = 0x2000, scoped, tag = 'input window, operand 1, single buffered']
    #allocation6 [shape = 's32[1]{0}', space=sflag, size = 0x4, scoped, tag = 'scoped memory for tpu_custom_call.1']
    #allocation7 [shape = 'u8[16384]{0}', space=vmem, size = 0x4000, scoped, tag = 'input window, operand 3, single buffered']
    #allocation8 [shape = 'u8[8192]{0}', space=vmem, size = 0x2000, scoped, tag = 'output window, operand 0, single buffered']
    #allocation9 [shape = 'u8[8192]{0}', space=vmem, size = 0x2000, scoped, tag = 'output window, operand 1, single buffered']
    #allocation10 [shape = 's32[1]{0}', space=sflag, size = 0x4, scoped, tag = 'scoped memory for tpu_custom_call.1']
    %12 = vsyncpa [#allocation3], 0
    %13 = vsyncpa [#allocation6], 0
    %14 = vsyncpa [#allocation4], 0
    %15 = vsyncpa [#allocation10], 0
    // Predicated region
    $region2: #{tpu_custom_call.1} parent=1 // pred_check
      _
    $region3: #{tpu_custom_call.1} parent=1 // pred_check_branch
      %17 = sbr.rel (0) target = $region5
    $region4: #{tpu_custom_call.1} parent=1 // pred_region
      %19 = vsyncadd [#allocation3], 0
      %s20 = sshll.u32 %s0, 4
      %s21 = int_to_ptr.hbm [resolvable:$true] %s20
      %s22 = sshll.u32 [#allocation2], 4
      %s23 = int_to_ptr.vmem [resolvable:$true] %s22
      %28 = dma.hbm_to_vmem [thread:$0]  %s21, 256, %s23, [#allocation3], 128, 128, 8
    $region5: #{tpu_custom_call.1} parent=1 // pred_fallthru
      _
    // Predicated region
    $region6: #{tpu_custom_call.1} parent=1 // pred_check
      _
    $region7: #{tpu_custom_call.1} parent=1 // pred_check_branch
      %30 = sbr.rel (0) target = $region9
    $region8: #{tpu_custom_call.1} parent=1 // pred_region
      %32 = vsyncadd [#allocation6], 0
      %s33 = sshll.u32 %s1, 4
      %s34 = int_to_ptr.hbm [resolvable:$true] %s33
      %s35 = sshll.u32 [#allocation5], 4
      %s36 = int_to_ptr.vmem [resolvable:$true] %s35
      %41 = dma.hbm_to_vmem [thread:$0]  %s34, 256, %s36, [#allocation6], 128, 128, 8
    $region9: #{tpu_custom_call.1} parent=1 // pred_fallthru
      _
    // Predicated region
    $region10: #{tpu_custom_call.1} parent=1 // pred_check
      _
    $region11: #{tpu_custom_call.1} parent=1 // pred_check_branch
      %43 = sbr.rel (0) target = $region13
    $region12: #{tpu_custom_call.1} parent=1 // pred_region
      _
    $region13: #{tpu_custom_call.1} parent=1 // pred_fallthru
      _
    // Predicated region
    $region14: #{tpu_custom_call.1} parent=1 // pred_check
      _
    $region15: #{tpu_custom_call.1} parent=1 // pred_check_branch
      %45 = sbr.rel (0) target = $region17
    $region16: #{tpu_custom_call.1} parent=1 // pred_region
      %47 = vsyncadd [#allocation6], 0
      %s48 = sshll.u32 %s3, 4
      %s49 = int_to_ptr.hbm [resolvable:$true] %s48
      %s50 = sshll.u32 [#allocation7], 4
      %s51 = int_to_ptr.vmem [resolvable:$true] %s50
      %56 = dma.hbm_to_vmem [thread:$0]  %s49, 512, %s51, [#allocation6], 128, 128, 8
    $region17: #{tpu_custom_call.1} parent=1 // pred_fallthru
      _
    // Predicated region
    $region18: #{tpu_custom_call.1} parent=1 // pred_check
      _
    $region19: #{tpu_custom_call.1} parent=1 // pred_check_branch
      %58 = sbr.rel (0) target = $region21
    $region20: #{tpu_custom_call.1} parent=1 // pred_region
      _
    $region21: #{tpu_custom_call.1} parent=1 // pred_fallthru
      _
    // Predicated region
    $region22: #{tpu_custom_call.1} parent=1 // pred_check
      _
    $region23: #{tpu_custom_call.1} parent=1 // pred_check_branch
      %60 = sbr.rel (0) target = $region25
    $region24: #{tpu_custom_call.1} parent=1 // pred_region
      %62 = dma.done [#allocation3], 256
    $region25: #{tpu_custom_call.1} parent=1 // pred_fallthru
      _
    // Predicated region
    $region26: #{tpu_custom_call.1} parent=1 // pred_check
      _
    $region27: #{tpu_custom_call.1} parent=1 // pred_check_branch
      %64 = sbr.rel (0) target = $region29
    $region28: #{tpu_custom_call.1} parent=1 // pred_region
      %66 = dma.done [#allocation6], 256
    $region29: #{tpu_custom_call.1} parent=1 // pred_fallthru
      _
    // Predicated region
    $region30: #{tpu_custom_call.1} parent=1 // pred_check
      _
    $region31: #{tpu_custom_call.1} parent=1 // pred_check_branch
      %68 = sbr.rel (0) target = $region33
    $region32: #{tpu_custom_call.1} parent=1 // pred_region
      %70 = dma.done [#allocation6], 512
    $region33: #{tpu_custom_call.1} parent=1 // pred_fallthru
      _
    %v71 = vld [vmem:[#allocation2] sm:$0xff]
    %v72 = vld [vmem:[#allocation2 + $0x8] sm:$0xff]
    %v73 = vld [vmem:[#allocation5] sm:$0xff]
    %v74 = vld [vmem:[#allocation5 + $0x8] sm:$0xff]
    %v75 = vld [vmem:[#allocation7] sm:$0xff]
    %v76 = vld [vmem:[#allocation7 + $0x8] sm:$0xff]
    %v77 = vld [vmem:[#allocation7 + $0x10] sm:$0xff]
    %v78 = vld [vmem:[#allocation7 + $0x18] sm:$0xff]
    %v79 = vld [vmem:[%s4] sm:$0x1]
    %v81 = vperm.slane %v79, 0
    %vm83 = vcmask 261120
    %v85 = vsel %vm83, %v71, 0
    %v88 = vsel %vm83, %v72, 0
    %v91 = vsel %vm83, %v75, 0
    %v94 = vsel %vm83, %v76, 0
    %v97 = vsel %vm83, %v77, 0
    %v100 = vsel %vm83, %v78, 0
    %102 = vmatpush.xpose.msra.mxu0 0.0
    %103 = vmatpush.xpose.msra.mxu0 0.0
    %104 = vmatpush.xpose.msra.mxu0 0.0
    %105 = vmatpush.xpose.msra.mxu0 0.0
    %106 = vmatpush.xpose.msra.mxu0 0.0
    %107 = vmatpush.xpose.msra.mxu0 0.0
    %108 = vmatpush.xpose.msra.mxu0 0.0
    %109 = vmatpush.xpose.msra.mxu0 0.0
    %110 = vmatpush.xpose.msra.mxu0 0.0
    %111 = vmatpush.xpose.msra.mxu0 0.0
    %112 = vmatpush.xpose.msra.mxu0 0.0
    %113 = vmatpush.xpose.msra.mxu0 0.0
    %114 = vmatpush.xpose.msra.mxu0 %v100
    %115 = vmatpush.xpose.msra.mxu0 %v97
    %116 = vmatpush.xpose.msra.mxu0 %v94
    %117 = vmatpush.xpose.msra.mxu0 %v91
    %118 = vmatmul.f32.gmra.mxu0 %v85
    %v119 = vpop.f32.mrf.mxu0
    %v120 = vadd.f32 %v81, %v119
    %121 = vmatmul.f32.gmra.mxu0 %v88
    %v122 = vpop.f32.mrf.mxu0
    %v123 = vadd.f32 %v81, %v122
    %124 = vdwg.mxu0
    %v126 = vsel %vm83, %v120, 0
    %v129 = vsel %vm83, %v73, 0
    %131 = vmatpush.xpose.msra.mxu0 0.0
    %132 = vmatpush.xpose.msra.mxu0 0.0
    %133 = vmatpush.xpose.msra.mxu0 0.0
    %134 = vmatpush.xpose.msra.mxu0 0.0
    %135 = vmatpush.xpose.msra.mxu0 0.0
    %136 = vmatpush.xpose.msra.mxu0 0.0
    %137 = vmatpush.xpose.msra.mxu0 0.0
    %138 = vmatpush.xpose.msra.mxu0 0.0
    %139 = vmatpush.xpose.msra.mxu0 0.0
    %140 = vmatpush.xpose.msra.mxu0 0.0
    %141 = vmatpush.xpose.msra.mxu0 0.0
    %142 = vmatpush.xpose.msra.mxu0 0.0
    %143 = vmatpush.xpose.msra.mxu0 0.0
    %144 = vmatpush.xpose.msra.mxu0 0.0
    %145 = vmatpush.xpose.msra.mxu0 0.0
    %146 = vmatpush.xpose.msra.mxu0 %v129
    %147 = vmatmul.f32.gmra.mxu0 %v126
    %v148 = vpop.f32.mrf.mxu0
    %v149 = vadd.f32 0.0, %v148
    %150 = vdwg.mxu0
    %v152 = vsel %vm83, %v123, 0
    %v155 = vsel %vm83, %v74, 0
    %157 = vmatpush.xpose.msra.mxu0 0.0
    %158 = vmatpush.xpose.msra.mxu0 0.0
    %159 = vmatpush.xpose.msra.mxu0 0.0
    %160 = vmatpush.xpose.msra.mxu0 0.0
    %161 = vmatpush.xpose.msra.mxu0 0.0
    %162 = vmatpush.xpose.msra.mxu0 0.0
    %163 = vmatpush.xpose.msra.mxu0 0.0
    %164 = vmatpush.xpose.msra.mxu0 0.0
    %165 = vmatpush.xpose.msra.mxu0 0.0
    %166 = vmatpush.xpose.msra.mxu0 0.0
    %167 = vmatpush.xpose.msra.mxu0 0.0
    %168 = vmatpush.xpose.msra.mxu0 0.0
    %169 = vmatpush.xpose.msra.mxu0 0.0
    %170 = vmatpush.xpose.msra.mxu0 0.0
    %171 = vmatpush.xpose.msra.mxu0 0.0
    %172 = vmatpush.xpose.msra.mxu0 %v155
    %173 = vmatmul.f32.gmra.mxu0 %v152
    %v174 = vpop.f32.mrf.mxu0
    %v175 = vadd.f32 0.0, %v174
    %176 = vdwg.mxu0
    %v177 = vld [vmem:[%s2] sm:$0x3]
    %v178 = vlaneseq
    %v179 = vand.u32 %v178, 127
    %v180 = vrot.slane %v177, 1
    %v181 = vperm.slane %v177, 0
    %v182 = vperm.slane %v180, 0
    %183 = vset.pattern.permute.xlu0 0
    %184 = vperm.xlu0 %183, %v181
    %v185 = vpop.permute.xlu0 %184
    %186 = vset.pattern.permute.xlu0 0
    %187 = vperm.xlu0 %186, %v182
    %v188 = vpop.permute.xlu0 %187
    %vm189 = vcmp.ge.s32.totalorder %v179, %v185
    %vm190 = vcmp.ge.s32.totalorder %v179, %v188
    %v191 = vsel %vm189, -inf, %v149
    %v192 = vsel %vm190, -inf, %v175
    %vm193 = vcmask 64512
    %v194 = vsel %vm193, %v191, -inf
    %195 = vmax.xlane.f32.xlu0 %v194
    %v196 = vpop.xlane.xlu0 %195
    %v197 = vsel %vm193, %v192, -inf
    %198 = vmax.xlane.f32.xlu0 %v197
    %v199 = vpop.xlane.xlu0 %198
    %v200 = vsub.f32 %v191, %v196
    %v201 = vsub.f32 %v192, %v199
    %v202 = vmul.f32 %v200, 1.442695
    %v203 = vpow.pop %v202
    %v204 = vmul.f32 %v201, 1.442695
    %v205 = vpow.pop %v204
    %v206 = vsel %vm193, %v203, 0.0
    %207 = vadd.xlane.f32.xlu0 %v206
    %v208 = vpop.xlane.xlu0 %207
    %v209 = vsel %vm193, %v205, 0.0
    %210 = vadd.xlane.f32.xlu0 %v209
    %v211 = vpop.xlane.xlu0 %210
    %v212 = vrcp.pop %v208
    %v213 = vmul.f32 %v208, %v212
    %v214 = vsub.f32 1.0, %v213
    %v215 = vmul.f32 %v212, %v214
    %v216 = vadd.f32 %v212, %v215
    %vm217 = vweird.f32 %v208
    %vm218 = vweird.f32 %v212
    %vm219 = vmor %vm217, %vm218
    %v220 = vsel %vm219, %v212, %v216
    %v221 = vand.u32 2147483647, %v208
    %vm222 = vcmp.eq.f32.partialorder %v221, 8.507059e+37
    %v223 = vand.u32 %v208, 2147483648
    %v224 = vor.u32 1.1754944e-38, %v223
    %v225 = vsel %vm222, %v224, %v220
    %v226 = vrcp.pop %v211
    %v227 = vmul.f32 %v211, %v226
    %v228 = vsub.f32 1.0, %v227
    %v229 = vmul.f32 %v226, %v228
    %v230 = vadd.f32 %v226, %v229
    %vm231 = vweird.f32 %v211
    %vm232 = vweird.f32 %v226
    %vm233 = vmor %vm231, %vm232
    %v234 = vsel %vm233, %v226, %v230
    %v235 = vand.u32 2147483647, %v211
    %vm236 = vcmp.eq.f32.partialorder %v235, 8.507059e+37
    %v237 = vand.u32 %v211, 2147483648
    %v238 = vor.u32 1.1754944e-38, %v237
    %v239 = vsel %vm236, %v238, %v234
    %v240 = vmul.f32 %v203, %v225
    %v241 = vmul.f32 %v205, %v239
    %v243 = vsel %vm193, %v240, 0
    %245 = vmatpush.msra.mxu0 0.0
    %246 = vmatpush.msra.mxu0 0.0
    %247 = vmatpush.msra.mxu0 0.0
    %248 = vmatpush.msra.mxu0 0.0
    %249 = vmatpush.msra.mxu0 0.0
    %250 = vmatpush.msra.mxu0 0.0
    %251 = vmatpush.msra.mxu0 0.0
    %252 = vmatpush.msra.mxu0 0.0
    %253 = vmatpush.msra.mxu0 0.0
    %254 = vmatpush.msra.mxu0 0.0
    %255 = vmatpush.msra.mxu0 0.0
    %256 = vmatpush.msra.mxu0 0.0
    %257 = vmatpush.msra.mxu0 0.0
    %258 = vmatpush.msra.mxu0 0.0
    %259 = vmatpush.msra.mxu0 0.0
    %260 = vmatpush.msra.mxu0 %v73
    %261 = vmatmul.f32.gmra.mxu0 %v243
    %v262 = vpop.f32.mrf.mxu0
    %v263 = vadd.f32 0.0, %v262
    %264 = vdwg.mxu0
    %v266 = vsel %vm193, %v241, 0
    %268 = vmatpush.msra.mxu0 0.0
    %269 = vmatpush.msra.mxu0 0.0
    %270 = vmatpush.msra.mxu0 0.0
    %271 = vmatpush.msra.mxu0 0.0
    %272 = vmatpush.msra.mxu0 0.0
    %273 = vmatpush.msra.mxu0 0.0
    %274 = vmatpush.msra.mxu0 0.0
    %275 = vmatpush.msra.mxu0 0.0
    %276 = vmatpush.msra.mxu0 0.0
    %277 = vmatpush.msra.mxu0 0.0
    %278 = vmatpush.msra.mxu0 0.0
    %279 = vmatpush.msra.mxu0 0.0
    %280 = vmatpush.msra.mxu0 0.0
    %281 = vmatpush.msra.mxu0 0.0
    %282 = vmatpush.msra.mxu0 0.0
    %283 = vmatpush.msra.mxu0 %v74
    %284 = vmatmul.f32.gmra.mxu0 %v266
    %v285 = vpop.f32.mrf.mxu0
    %v286 = vadd.f32 0.0, %v285
    %287 = vdwg.mxu0
    %288 = vst.msk [vmem:[#allocation8] sm:$0xff] %vm83, %v263
    %289 = vst.msk [vmem:[#allocation8 + $0x8] sm:$0xff] %vm83, %v286
    %290 = vst.msk [vmem:[#allocation9] sm:$0xff] %vm193, %v240
    %291 = vst.msk [vmem:[#allocation9 + $0x8] sm:$0xff] %vm193, %v241
    // Predicated region
    $region34: #{tpu_custom_call.1} parent=1 // pred_check
      _
    $region35: #{tpu_custom_call.1} parent=1 // pred_check_branch
      %293 = sbr.rel (0) target = $region37
    $region36: #{tpu_custom_call.1} parent=1 // pred_region
      %295 = vsyncadd [#allocation4], 0
      %s296 = sshll.u32 [#allocation8], 4
      %s297 = int_to_ptr.vmem [resolvable:$true] %s296
      %s298 = sshll.u32 %s5, 4
      %s299 = int_to_ptr.hbm [resolvable:$true] %s298
      %304 = dma.vmem_to_hbm [thread:$0]  %s297, 256, %s299, [#allocation4], 128, 128, 8
    $region37: #{tpu_custom_call.1} parent=1 // pred_fallthru
      _
    // Predicated region
    $region38: #{tpu_custom_call.1} parent=1 // pred_check
      _
    $region39: #{tpu_custom_call.1} parent=1 // pred_check_branch
      %306 = sbr.rel (0) target = $region41
    $region40: #{tpu_custom_call.1} parent=1 // pred_region
      %308 = vsyncadd [#allocation10], 0
      %s309 = sshll.u32 [#allocation9], 4
      %s310 = int_to_ptr.vmem [resolvable:$true] %s309
      %s311 = sshll.u32 %s6, 4
      %s312 = int_to_ptr.hbm [resolvable:$true] %s311
      %317 = dma.vmem_to_hbm [thread:$0]  %s310, 256, %s312, [#allocation10], 128, 128, 8
    $region41: #{tpu_custom_call.1} parent=1 // pred_fallthru
      _
    // Predicated region
    $region42: #{tpu_custom_call.1} parent=1 // pred_check
      _
    $region43: #{tpu_custom_call.1} parent=1 // pred_check_branch
      %319 = sbr.rel (0) target = $region45
    $region44: #{tpu_custom_call.1} parent=1 // pred_region
      %321 = dma.done [#allocation4], 256
    $region45: #{tpu_custom_call.1} parent=1 // pred_fallthru
      _
    // Predicated region
    $region46: #{tpu_custom_call.1} parent=1 // pred_check
      _
    $region47: #{tpu_custom_call.1} parent=1 // pred_check_branch
      %323 = sbr.rel (0) target = $region49
    $region48: #{tpu_custom_call.1} parent=1 // pred_region
      %325 = dma.done [#allocation10], 256
    $region49: #{tpu_custom_call.1} parent=1 // pred_fallthru
      _
    %326 = vsyncpa [#allocation3], 1
    %327 = vsyncpa [#allocation6], 1
    %328 = vsyncpa [#allocation4], 1
    %329 = vsyncpa [#allocation10], 1

</llo_original>
